<compile_context>
chip_gen: v7x
topology: tpu7x:2x2x1
jax: 0.10.0
libtpu: 0.0.40
codegen_flags: <defaults>
</compile_context>

<pallas_src>
import jax
import jax.numpy as jnp
from jax.experimental import pallas as pl
from jax.experimental.pallas import tpu as pltpu


def _linear1x1_kernel(w_ref, b_ref, x_ref, o_ref):
    # out = x * w + b.  Compute in f32 (v5e VPU has no bf16 math), store in the
    # output's (== input's) dtype.  w/b are SMEM scalars.
    xv = x_ref[...].astype(jnp.float32)
    o_ref[...] = (xv * w_ref[0] + b_ref[0]).astype(o_ref.dtype)


_TILE_ELEMS = 1 << 20            # ~4 MiB f32 per buffer per grid step
_VMEM_LIMIT = 32 * 1024 * 1024   # double-buffered in+out stays well under this


def _round_up(x: int, m: int) -> int:
    return (x + m - 1) // m * m


@jax.jit
def linear_forward(x, weight, bias):
    """Forward of nn.Linear(1, 1): x (B, 1), weight (1, 1), bias (1,) -> (B, 1)."""
    batch, in_features = x.shape
    out_features = weight.shape[0]
    assert in_features == 1 and out_features == 1 and weight.shape == (1, 1)

    w = weight.reshape(1).astype(jnp.float32)   # (1,) SMEM scalar
    b = bias.reshape(1).astype(jnp.float32)     # (1,) SMEM scalar

    # Lane-dense slab: pick a lane width (multiple of 128; wider for big batches),
    # pad the flat batch to a multiple of 8*cols so every block is a full,
    # unmasked (8,128)-tiled write, then slice back to the true batch at the end.
    if batch >= (1 << 21):
        cols = 2048
    elif batch >= (1 << 16):
        cols = 512
    else:
        cols = 128

    padded = _round_up(batch, 8 * cols)
    rows = padded // cols                       # always a multiple of 8

    xf = x.reshape(batch)
    if padded != batch:
        xf = jnp.pad(xf, (0, padded - batch))
    x2 = xf.reshape(rows, cols)

    max_block_rows = max(8, (_TILE_ELEMS // cols) // 8 * 8)
    if rows <= 8:
        block_rows = rows
    else:
        # At least 2 programs so the "parallel" axis shards across both v7x TCs;
        # cap the tile at ~4 MiB per buffer for step-overhead amortization.
        block_rows = min(max_block_rows, _round_up(pl.cdiv(rows, 2), 8))
    grid = (pl.cdiv(rows, block_rows),)

    out_dtype = x.dtype
    elem_bytes = jnp.dtype(out_dtype).itemsize
    cost = pl.CostEstimate(
        flops=2 * padded,
        transcendentals=0,
        bytes_accessed=2 * padded * elem_bytes,
    )

    out2 = pl.pallas_call(
        _linear1x1_kernel,
        out_shape=jax.ShapeDtypeStruct((rows, cols), out_dtype),
        grid_spec=pltpu.PrefetchScalarGridSpec(
            num_scalar_prefetch=0,
            grid=grid,
            in_specs=[
                pl.BlockSpec(memory_space=pltpu.MemorySpace.SMEM),   # weight scalar
                pl.BlockSpec(memory_space=pltpu.MemorySpace.SMEM),   # bias scalar
                pl.BlockSpec((block_rows, cols), lambda i: (i, 0)),  # x tile
            ],
            out_specs=pl.BlockSpec((block_rows, cols), lambda i: (i, 0)),
        ),
        compiler_params=pltpu.CompilerParams(
            dimension_semantics=("parallel",),
            vmem_limit_bytes=_VMEM_LIMIT,
        ),
        cost_estimate=cost,
    )(w, b, x2)

    # Padded tail elements hold w*0 + b; drop them before returning.
    return out2.reshape(padded)[:batch].reshape(batch, out_features)


if __name__ == "__main__":
    input_dim = 1
    output_dim = 1
    batch = 8

    key = jax.random.PRNGKey(0)
    k_x, k_w, k_b = jax.random.split(key, 3)

    # Deterministic parameter init mimicking nn.Linear: U(-1/sqrt(in), 1/sqrt(in)).
    bound = 1.0 / jnp.sqrt(jnp.float32(input_dim))
    weight = jax.random.uniform(
        k_w, (output_dim, input_dim), jnp.float32, minval=-bound, maxval=bound
    )
    bias = jax.random.uniform(
        k_b, (output_dim,), jnp.float32, minval=-bound, maxval=bound
    )
    x = jax.random.normal(k_x, (batch, input_dim), jnp.float32)

    out = linear_forward(x, weight, bias)
    jax.block_until_ready(out)

    ref = x @ weight.T + bias
    assert out.shape == (batch, output_dim)
    assert jnp.allclose(out, ref, atol=1e-5, rtol=1e-5), "mismatch vs reference"

    # Extra coverage: ragged batch exercises the pad + slice-back path.
    x_r = jax.random.normal(jax.random.PRNGKey(1), (300, input_dim), jnp.float32)
    out_r = linear_forward(x_r, weight, bias)
    jax.block_until_ready(out_r)
    assert jnp.allclose(out_r, x_r @ weight.T + bias, atol=1e-5, rtol=1e-5)

    print("KERNEL_OK")
</pallas_src>

<mosaic_0001>
module attributes {stable_mosaic.version = 11 : i64} {
  func.func @_linear1x1_kernel(%arg0: i32, %arg1: memref<1xf32, #tpu.memory_space<smem>>, %arg2: memref<1xf32, #tpu.memory_space<smem>>, %arg3: memref<8x128xf32, #tpu.memory_space<vmem>>, %arg4: memref<8x128xf32, #tpu.memory_space<vmem>>) attributes {dimension_semantics = [#tpu.dimension_semantics<parallel>], iteration_bounds = array<i64: 1>, scalar_prefetch = 0 : i64, scratch_operands = 0 : i64, tpu.core_type = #tpu.core_type<tc>, window_params = [{transform_indices = @transform_0, window_bounds = array<i64: 1>}, {transform_indices = @transform_1, window_bounds = array<i64: 1>}, {transform_indices = @transform_2, window_bounds = array<i64: 8, 128>}, {transform_indices = @transform_3, window_bounds = array<i64: 8, 128>}]} {
    %c0 = arith.constant 0 : index
    %c0_0 = arith.constant 0 : index
    %0 = vector.load %arg3[%c0, %c0_0] : memref<8x128xf32, #tpu.memory_space<vmem>>, vector<8x128xf32>
    %c0_1 = arith.constant 0 : index
    %1 = memref.load %arg1[%c0_1] : memref<1xf32, #tpu.memory_space<smem>>
    %2 = vector.broadcast %1 : f32 to vector<8x128xf32>
    %3 = arith.mulf %0, %2 : vector<8x128xf32>
    %c0_2 = arith.constant 0 : index
    %4 = memref.load %arg2[%c0_2] : memref<1xf32, #tpu.memory_space<smem>>
    %5 = vector.broadcast %4 : f32 to vector<8x128xf32>
    %6 = arith.addf %3, %5 : vector<8x128xf32>
    %c0_3 = arith.constant 0 : index
    %c0_4 = arith.constant 0 : index
    %7 = vector.load %arg4[%c0_3, %c0_4] : memref<8x128xf32, #tpu.memory_space<vmem>>, vector<8x128xf32>
    tpu.vector_store %arg4[%c0_3, %c0_4], %6 {strides = array<i32>} : memref<8x128xf32, #tpu.memory_space<vmem>>, vector<8x128xf32>,
    return
  }
  func.func @transform_0(%arg0: i32) -> i32 {
    %c0_i32 = arith.constant 0 : i32
    %c0_i32_0 = arith.constant 0 : i32
    return %c0_i32 : i32
  }
  func.func @transform_1(%arg0: i32) -> i32 {
    %c0_i32 = arith.constant 0 : i32
    %c0_i32_0 = arith.constant 0 : i32
    return %c0_i32 : i32
  }
  func.func @transform_2(%arg0: i32) -> (i32, i32) {
    %c0_i32 = arith.constant 0 : i32
    %c0_i32_0 = arith.constant 0 : i32
    return %arg0, %c0_i32 : i32, i32
  }
  func.func @transform_3(%arg0: i32) -> (i32, i32) {
    %c0_i32 = arith.constant 0 : i32
    %c0_i32_0 = arith.constant 0 : i32
    return %arg0, %c0_i32 : i32, i32
  }
}

</mosaic_0001>

<llo_original>
// kernel: linear_forward.1
$region0: #{linear_forward.1}
  #allocation0 [shape = 'u32[]', space=smem, size = 0x4, offset = 0x4, fixed_abs, tag = 'smem constant byte address 0x4 - core index']
  #allocation1 [shape = 'u32[144,128]{1,0:T(1,128)}', space=vmem, size = 0x12000, scoped, tag = 'internal scratch']
  #allocation2 [shape = 'f32[1]{0:T(128)S(6)}', space=smem, size = 0x200, scoped, tag = 'scoped memory for linear_forward.1']
  #allocation3 [shape = 'f32[1]{0:T(128)S(6)}', space=smem, size = 0x200, scoped, tag = 'scoped memory for linear_forward.1']
  %s0 = inlined_call_operand.<no memory space> [shape: f32[1], index: 0, kind: input, shape index: {}]
  %s1 = inlined_call_operand.<no memory space> [shape: f32[1], index: 1, kind: input, shape index: {}]
  %s2 = inlined_call_operand.vmem [shape: f32[8,128], index: 2, kind: input, shape index: {}]
  %s3 = inlined_call_operand.vmem [shape: f32[8,128], index: 3, kind: output, shape index: {}]
  %s4 = sld [smem:[#allocation0]]
  $region22: #{linear_forward.1} parent=0
    _
  %s6 = ssub.s32 1, %s4
  %s7 = scalar_select 0, %s6, %s4
  %8 = sst [smem:[#allocation2]] %s0
  %9 = sst [smem:[#allocation3]] %s1
  // Predicated region
  $region2: #{linear_forward.1} parent=0 // pred_check
    _
  $region3: #{linear_forward.1} parent=0 // pred_check_branch
    %11 = sbr.rel (0) target = $region5
  $region4: #{linear_forward.1} parent=0 // pred_region
    _
  $region5: #{linear_forward.1} parent=0 // pred_fallthru
    _
  // Predicated region
  $region6: #{linear_forward.1} parent=0 // pred_check
    _
  $region7: #{linear_forward.1} parent=0 // pred_check_branch
    %13 = sbr.rel (0) target = $region9
  $region8: #{linear_forward.1} parent=0 // pred_region
    _
  $region9: #{linear_forward.1} parent=0 // pred_fallthru
    _
  // Predicated region
  $region10: #{linear_forward.1} parent=0 // pred_check
    _
  $region11: #{linear_forward.1} parent=0 // pred_check_branch
    %15 = sbr.rel (0) target = $region13
  $region12: #{linear_forward.1} parent=0 // pred_region
    _
  $region13: #{linear_forward.1} parent=0 // pred_fallthru
    _
  %v16 = vld [vmem:[%s2] sm:$0xff]
  %s17 = sld [smem:[#allocation2]]
  %v18 = vstv %s17
  %v19 = vmul.f32 %v16, %v18
  %s20 = sld [smem:[#allocation3]]
  %v21 = vstv %s20
  %v22 = vadd.f32 %v19, %v21
  %23 = vst [vmem:[%s3] sm:$0xff] %v22
  // Predicated region
  $region14: #{linear_forward.1} parent=0 // pred_check
    _
  $region15: #{linear_forward.1} parent=0 // pred_check_branch
    %25 = sbr.rel (0) target = $region17
  $region16: #{linear_forward.1} parent=0 // pred_region
    _
  $region17: #{linear_forward.1} parent=0 // pred_fallthru
    _
  // Predicated region
  $region18: #{linear_forward.1} parent=0 // pred_check
    _
  $region19: #{linear_forward.1} parent=0 // pred_check_branch
    %27 = sbr.rel (0) target = $region21
  $region20: #{linear_forward.1} parent=0 // pred_region
    _
  $region21: #{linear_forward.1} parent=0 // pred_fallthru
    _

</llo_original>
